<compile_context>
chip_gen: v5e
topology: v5e:2x2
jax: 0.10.0
libtpu: 0.0.40
codegen_flags: <defaults>
</compile_context>

<pallas_src>
import functools

import jax
import jax.numpy as jnp
from jax import lax
from jax.experimental import pallas as pl
from jax.experimental.pallas import tpu as pltpu


def _round_up(x, m):
    return ((x + m - 1) // m) * m


def _hash_keep(lin_i32, seed_i32, threshold):
    """Counter-based hash PRNG (lowbias32). keep prob ~= 1 - p.

    Works on TPU hardware and in interpret mode (pure integer VPU ops).
    `lin_i32` is the global linear index of each weight element, `seed_i32`
    a scalar int32 seed, `threshold` a Python int == round(p * 2**32).
    """
    # seed * 0x9E3779B1 (mod 2**32), expressed with a signed constant.
    h = (lin_i32 + seed_i32 * jnp.int32(-1640531535)).astype(jnp.uint32)
    h = h ^ (h >> 16)
    h = h * jnp.uint32(0x7FEB352D)
    h = h ^ (h >> 15)
    h = h * jnp.uint32(0x846CA68B)
    h = h ^ (h >> 16)
    return h >= jnp.uint32(threshold)


def _weight_drop_linear_kernel(seed_ref, x_ref, w_ref, b_ref, o_ref, acc_ref,
                               *, apply_mask, threshold, scale, n_pad):
    """One (i, j, k) grid step of y = x @ dropout(w).T + b, w pre-transposed to (IN, OUT)."""
    k = pl.program_id(2)

    @pl.when(k == 0)
    def _init():
        acc_ref[...] = jnp.zeros_like(acc_ref)

    w = w_ref[...]
    if apply_mask:
        j = pl.program_id(1)
        bk, bn = w_ref.shape
        # Global (row=IN index, col=OUT index) of this weight tile in the padded
        # (Kp, Np) transposed weight.  Independent of the batch tile `i`, so the
        # dropout mask is identical for all batch tiles (weight dropped once per
        # forward).  NOTE: Kp * Np must fit in int32.
        row = lax.broadcasted_iota(jnp.int32, (bk, bn), 0) + k * bk
        col = lax.broadcasted_iota(jnp.int32, (bk, bn), 1) + j * bn
        lin = row * jnp.int32(n_pad) + col
        keep = _hash_keep(lin, seed_ref[0], threshold)
        # Compare + select only; 1/(1-p) scaling is folded into the finalize.
        w = jnp.where(keep, w, jnp.zeros_like(w))

    acc_ref[...] += jnp.dot(x_ref[...], w, preferred_element_type=jnp.float32)

    @pl.when(k == pl.num_programs(2) - 1)
    def _finalize():
        acc = acc_ref[...]
        if scale != 1.0:
            acc = acc * jnp.float32(scale)
        o_ref[...] = (acc + b_ref[...].astype(jnp.float32)).astype(o_ref.dtype)


def weight_drop_linear(x, w_raw, b, seed, *, p=0.5, training=True):
    """WeightDrop(nn.Linear(IN, OUT), ['weight'], dropout=p).forward(x) on TPU.

    A fresh dropout mask per forward is obtained by passing a fresh `seed`
    (PyTorch draws from the global RNG; here the seed is explicit).
    """
    B, IN = x.shape
    OUT, IN_w = w_raw.shape
    assert IN == IN_w
    assert b.shape == (OUT,)

    # Compile-time dropout configuration.
    if training and p >= 1.0:
        # F.dropout(w, p=1) -> all-zero weight; output is just the bias.
        apply_mask, scale, threshold = False, 0.0, 0
    elif training and p > 0.0:
        apply_mask = True
        scale = 1.0 / (1.0 - p)
        threshold = min(int(round(p * 2.0 ** 32)), 2 ** 32 - 1)
    else:
        apply_mask, scale, threshold = False, 1.0, 0

    # Pad lane dims to 128-multiples (lane-dense stores / MXU-friendly tiles),
    # batch to a multiple of 8.  Sliced back after the call.
    Kp = _round_up(IN, 128)
    Np = _round_up(OUT, 128)
    bk = 256 if Kp % 256 == 0 else 128   # MXU-native 256 on v6e/v7x, 128 ok on v5e
    bn = 256 if Np % 256 == 0 else 128
    bm = 128 if B >= 128 else _round_up(B, 8)
    Bp = _round_up(B, bm)

    x_p = jnp.pad(x, ((0, Bp - B), (0, Kp - IN)))
    # Transpose once in the wrapper -> (IN, OUT): no in-kernel transpose.
    wT_p = jnp.pad(w_raw.T, ((0, Kp - IN), (0, Np - OUT)))
    b_p = jnp.pad(b, (0, Np - OUT)).reshape(1, Np)
    seed_arr = jnp.asarray([seed], dtype=jnp.int32)

    grid = (Bp // bm, Np // bn, Kp // bk)

    kernel = functools.partial(
        _weight_drop_linear_kernel,
        apply_mask=apply_mask, threshold=threshold, scale=scale, n_pad=Np)

    out_p = pl.pallas_call(
        kernel,
        out_shape=jax.ShapeDtypeStruct((Bp, Np), x.dtype),
        grid_spec=pltpu.PrefetchScalarGridSpec(
            num_scalar_prefetch=1,        # seed lands in SMEM
            grid=grid,
            in_specs=[
                pl.BlockSpec((bm, bk), lambda i, j, k, s: (i, k)),   # x tile
                pl.BlockSpec((bk, bn), lambda i, j, k, s: (k, j)),   # w^T tile
                pl.BlockSpec((1, bn),  lambda i, j, k, s: (0, j)),   # bias tile
            ],
            out_specs=pl.BlockSpec((bm, bn), lambda i, j, k, s: (i, j)),
            scratch_shapes=[pltpu.VMEM((bm, bn), jnp.float32)],      # f32 accumulator
        ),
        compiler_params=pltpu.CompilerParams(
            dimension_semantics=("parallel", "parallel", "arbitrary"),
        ),
    )(seed_arr, x_p, wT_p, b_p)

    return out_p[:B, :OUT]


if __name__ == "__main__":
    # Small shapes consistent with WeightDrop wrapping nn.Linear(hidden, hidden).
    batch, in_features, out_features = 8, 32, 32
    dropout_p = 0.5
    seed = 1234

    key = jax.random.PRNGKey(0)
    kx, kw, kb = jax.random.split(key, 3)
    x = jax.random.normal(kx, (batch, in_features), dtype=jnp.float32)
    w_raw = jax.random.normal(kw, (out_features, in_features), dtype=jnp.float32) * 0.1
    b = jax.random.normal(kb, (out_features,), dtype=jnp.float32) * 0.1

    # --- training mode (weight dropout active) -------------------------------
    y_train = weight_drop_linear(x, w_raw, b, seed, p=dropout_p, training=True)
    jax.block_until_ready(y_train)

    # Pure-JAX reference using the *same* counter-hash mask as the kernel.
    Np = _round_up(out_features, 128)
    threshold = min(int(round(dropout_p * 2.0 ** 32)), 2 ** 32 - 1)
    row = jnp.arange(in_features, dtype=jnp.int32)[:, None]
    col = jnp.arange(out_features, dtype=jnp.int32)[None, :]
    keep_ref = _hash_keep(row * jnp.int32(Np) + col, jnp.int32(seed), threshold)
    w_dropped = jnp.where(keep_ref, w_raw.T, 0.0) / (1.0 - dropout_p)   # (IN, OUT)
    ref_train = jnp.dot(x, w_dropped, precision=jax.lax.Precision.HIGHEST) + b
    assert jnp.allclose(y_train, ref_train, atol=1e-4, rtol=1e-4)

    # --- eval mode (dropout is identity) --------------------------------------
    y_eval = weight_drop_linear(x, w_raw, b, 0, p=dropout_p, training=False)
    jax.block_until_ready(y_eval)
    ref_eval = jnp.dot(x, w_raw.T, precision=jax.lax.Precision.HIGHEST) + b
    assert jnp.allclose(y_eval, ref_eval, atol=1e-4, rtol=1e-4)

    # --- p = 1.0: weight fully dropped -> output is the bias ------------------
    y_drop_all = weight_drop_linear(x, w_raw, b, 7, p=1.0, training=True)
    jax.block_until_ready(y_drop_all)
    assert jnp.allclose(y_drop_all, jnp.broadcast_to(b, (batch, out_features)),
                        atol=1e-6, rtol=1e-6)

    assert y_train.shape == (batch, out_features)
    print("KERNEL_OK")
</pallas_src>

<mosaic_0001>
module attributes {stable_mosaic.version = 11 : i64} {
  func.func @_weight_drop_linear_kernel(%arg0: i32, %arg1: i32, %arg2: i32, %arg3: memref<1xi32, #tpu.memory_space<smem>>, %arg4: memref<8x128xf32, #tpu.memory_space<vmem>>, %arg5: memref<128x128xf32, #tpu.memory_space<vmem>>, %arg6: memref<1x128xf32, #tpu.memory_space<vmem>>, %arg7: memref<8x128xf32, #tpu.memory_space<vmem>>, %arg8: memref<8x128xf32, #tpu.memory_space<vmem>>) attributes {dimension_semantics = [#tpu.dimension_semantics<parallel>, #tpu.dimension_semantics<parallel>, #tpu.dimension_semantics<arbitrary>], iteration_bounds = array<i64: 1, 1, 1>, scalar_prefetch = 1 : i64, scratch_operands = 1 : i64, tpu.core_type = #tpu.core_type<tc>, window_params = [{transform_indices = @transform_0, window_bounds = array<i64: 8, 128>}, {transform_indices = @transform_1, window_bounds = array<i64: 128, 128>}, {transform_indices = @transform_2, window_bounds = array<i64: 1, 128>}, {transform_indices = @transform_3, window_bounds = array<i64: 8, 128>}]} {
    %c0_i32 = arith.constant 0 : i32
    %0 = arith.cmpi eq, %arg2, %c0_i32 : i32
    %1 = arith.extui %0 : i1 to i32
    %c0_i32_0 = arith.constant 0 : i32
    %2 = arith.cmpi ne, %1, %c0_i32_0 : i32
    scf.if %2 {
      %cst_15 = arith.constant 0.000000e+00 : f32
      %44 = vector.broadcast %cst_15 : f32 to vector<8x128xf32>
      %c0_16 = arith.constant 0 : index
      %c0_17 = arith.constant 0 : index
      %45 = vector.load %arg8[%c0_16, %c0_17] : memref<8x128xf32, #tpu.memory_space<vmem>>, vector<8x128xf32>
      tpu.vector_store %arg8[%c0_16, %c0_17], %44 {strides = array<i32>} : memref<8x128xf32, #tpu.memory_space<vmem>>, vector<8x128xf32>,
    } else {
    }
    %c0 = arith.constant 0 : index
    %c0_1 = arith.constant 0 : index
    %3 = vector.load %arg5[%c0, %c0_1] : memref<128x128xf32, #tpu.memory_space<vmem>>, vector<128x128xf32>
    %4 = tpu.iota {dimensions = array<i32: 0>} : vector<128x128xi32>
    %c128_i32 = arith.constant 128 : i32
    %5 = arith.muli %arg2, %c128_i32 : i32
    %6 = vector.broadcast %5 : i32 to vector<128x128xi32>
    %7 = arith.addi %4, %6 : vector<128x128xi32>
    %8 = tpu.iota {dimensions = array<i32: 1>} : vector<128x128xi32>
    %c128_i32_2 = arith.constant 128 : i32
    %9 = arith.muli %arg1, %c128_i32_2 : i32
    %10 = vector.broadcast %9 : i32 to vector<128x128xi32>
    %11 = arith.addi %8, %10 : vector<128x128xi32>
    %c128_i32_3 = arith.constant 128 : i32
    %12 = vector.broadcast %c128_i32_3 : i32 to vector<128x128xi32>
    %13 = arith.muli %7, %12 : vector<128x128xi32>
    %14 = arith.addi %13, %11 : vector<128x128xi32>
    %c0_4 = arith.constant 0 : index
    %15 = memref.load %arg3[%c0_4] : memref<1xi32, #tpu.memory_space<smem>>
    %c-1640531535_i32 = arith.constant -1640531535 : i32
    %16 = arith.muli %15, %c-1640531535_i32 : i32
    %17 = vector.broadcast %16 : i32 to vector<128x128xi32>
    %18 = arith.addi %14, %17 : vector<128x128xi32>
    %c16_i32 = arith.constant 16 : i32
    %19 = vector.broadcast %c16_i32 : i32 to vector<128x128xi32>
    %20 = arith.shrui %18, %19 : vector<128x128xi32>
    %21 = arith.xori %18, %20 : vector<128x128xi32>
    %c2146121005_i32 = arith.constant 2146121005 : i32
    %22 = vector.broadcast %c2146121005_i32 : i32 to vector<128x128xi32>
    %23 = arith.muli %21, %22 : vector<128x128xi32>
    %c15_i32 = arith.constant 15 : i32
    %24 = vector.broadcast %c15_i32 : i32 to vector<128x128xi32>
    %25 = arith.shrui %23, %24 : vector<128x128xi32>
    %26 = arith.xori %23, %25 : vector<128x128xi32>
    %c-2073254261_i32 = arith.constant -2073254261 : i32
    %27 = vector.broadcast %c-2073254261_i32 : i32 to vector<128x128xi32>
    %28 = arith.muli %26, %27 : vector<128x128xi32>
    %c16_i32_5 = arith.constant 16 : i32
    %29 = vector.broadcast %c16_i32_5 : i32 to vector<128x128xi32>
    %30 = arith.shrui %28, %29 : vector<128x128xi32>
    %31 = arith.xori %28, %30 : vector<128x128xi32>
    %c-2147483648_i32 = arith.constant -2147483648 : i32
    %32 = vector.broadcast %c-2147483648_i32 : i32 to vector<128x128xi32>
    %33 = arith.cmpi uge, %31, %32 : vector<128x128xi32>
    %cst = arith.constant 0.000000e+00 : f32
    %34 = vector.broadcast %cst : f32 to vector<128x128xf32>
    %35 = arith.select %33, %3, %34 : vector<128x128xi1>, vector<128x128xf32>
    %c0_6 = arith.constant 0 : index
    %c0_7 = arith.constant 0 : index
    %36 = vector.load %arg8[%c0_6, %c0_7] : memref<8x128xf32, #tpu.memory_space<vmem>>, vector<8x128xf32>
    %c0_8 = arith.constant 0 : index
    %c0_9 = arith.constant 0 : index
    %37 = vector.load %arg4[%c0_8, %c0_9] : memref<8x128xf32, #tpu.memory_space<vmem>>, vector<8x128xf32>
    %cst_10 = arith.constant dense<0.000000e+00> : vector<8x128xf32>
    %38 = tpu.matmul %37, %35, %cst_10 {dimension_numbers = #tpu.dot_dimension_numbers<[1], [0], [0], [1], [0, 0, 1, 1], [], []>} : vector<8x128xf32>, vector<128x128xf32>, vector<8x128xf32> -> vector<8x128xf32>
    %39 = arith.addf %36, %38 : vector<8x128xf32>
    %c0_11 = arith.constant 0 : index
    %c0_12 = arith.constant 0 : index
    %40 = vector.load %arg8[%c0_11, %c0_12] : memref<8x128xf32, #tpu.memory_space<vmem>>, vector<8x128xf32>
    tpu.vector_store %arg8[%c0_11, %c0_12], %39 {strides = array<i32>} : memref<8x128xf32, #tpu.memory_space<vmem>>, vector<8x128xf32>,
    %c0_i32_13 = arith.constant 0 : i32
    %41 = arith.cmpi eq, %arg2, %c0_i32_13 : i32
    %42 = arith.extui %41 : i1 to i32
    %c0_i32_14 = arith.constant 0 : i32
    %43 = arith.cmpi ne, %42, %c0_i32_14 : i32
    scf.if %43 {
      %c0_15 = arith.constant 0 : index
      %c0_16 = arith.constant 0 : index
      %44 = vector.load %arg8[%c0_15, %c0_16] : memref<8x128xf32, #tpu.memory_space<vmem>>, vector<8x128xf32>
      %cst_17 = arith.constant 2.000000e+00 : f32
      %45 = vector.broadcast %cst_17 : f32 to vector<8x128xf32>
      %46 = arith.mulf %44, %45 : vector<8x128xf32>
      %c0_18 = arith.constant 0 : index
      %c0_19 = arith.constant 0 : index
      %47 = vector.load %arg6[%c0_18, %c0_19] : memref<1x128xf32, #tpu.memory_space<vmem>>, vector<1x128xf32>
      %48 = vector.broadcast %47 : vector<1x128xf32> to vector<8x128xf32>
      %49 = arith.addf %46, %48 : vector<8x128xf32>
      %c0_20 = arith.constant 0 : index
      %c0_21 = arith.constant 0 : index
      %50 = vector.load %arg7[%c0_20, %c0_21] : memref<8x128xf32, #tpu.memory_space<vmem>>, vector<8x128xf32>
      tpu.vector_store %arg7[%c0_20, %c0_21], %49 {strides = array<i32>} : memref<8x128xf32, #tpu.memory_space<vmem>>, vector<8x128xf32>,
    } else {
    }
    return
  }
  func.func @transform_0(%arg0: i32, %arg1: i32, %arg2: i32, %arg3: memref<1xi32, #tpu.memory_space<smem>>) -> (i32, i32) {
    %c0_i32 = arith.constant 0 : i32
    return %arg0, %arg2 : i32, i32
  }
  func.func @transform_1(%arg0: i32, %arg1: i32, %arg2: i32, %arg3: memref<1xi32, #tpu.memory_space<smem>>) -> (i32, i32) {
    %c0_i32 = arith.constant 0 : i32
    return %arg2, %arg1 : i32, i32
  }
  func.func @transform_2(%arg0: i32, %arg1: i32, %arg2: i32, %arg3: memref<1xi32, #tpu.memory_space<smem>>) -> (i32, i32) {
    %c0_i32 = arith.constant 0 : i32
    %c0_i32_0 = arith.constant 0 : i32
    return %c0_i32, %arg1 : i32, i32
  }
  func.func @transform_3(%arg0: i32, %arg1: i32, %arg2: i32, %arg3: memref<1xi32, #tpu.memory_space<smem>>) -> (i32, i32) {
    %c0_i32 = arith.constant 0 : i32
    return %arg0, %arg1 : i32, i32
  }
}

</mosaic_0001>

<llo_original>
// kernel: tpu_custom_call.1
$region0: #{tpu_custom_call.1}
  #allocation0 [shape = 'u32[]', space=smem, size = 0x4, offset = 0x4, fixed_abs, tag = 'smem constant byte address 0x4 - core index']
  #allocation1 [shape = 'u32[72,128]{1,0:T(1,128)}', space=vmem, size = 0x9000, scoped, tag = 'internal scratch']
  #allocation2 [shape = 'f32[8,128]{1,0:T(8,128)}', space=vmem, size = 0x1000, scoped, tag = 'scratch operand']
  #allocation3 [shape = 's32[1]{0}', space=sflag, size = 0x4, scoped, tag = 'scoped memory for tpu_custom_call.1']
  #allocation4 [shape = 's32[1]{0:T(128)S(6)}', space=smem, size = 0x200, scoped, tag = 'prefetched SMEM operand 0']
  %s0 = inlined_call_operand.<no memory space> [shape: s32[1], index: 0, kind: input, shape index: {}]
  %s1 = inlined_call_operand.hbm [shape: f32[8,128], index: 1, kind: input, shape index: {}]
  %s2 = inlined_call_operand.hbm [shape: f32[128,128], index: 2, kind: input, shape index: {}]
  %s3 = inlined_call_operand.vmem [shape: f32[1,128], index: 3, kind: input, shape index: {}]
  %s4 = inlined_call_operand.hbm [shape: f32[8,128], index: 4, kind: output, shape index: {}]
  %s5 = sld [smem:[#allocation0]]
  $region38: #{tpu_custom_call.1} parent=0
    _
  %s7 = ssub.s32 1, %s5
  %s8 = scalar_select 0, %s7, %s5
  %9 = sst [smem:[#allocation4]] %s0
  $region1: #{tpu_custom_call.1} parent=0
    #allocation5 [shape = 'u8[4096]{0}', space=vmem, size = 0x1000, scoped, tag = 'input window, operand 1, single buffered']
    #allocation6 [shape = 's32[1]{0}', space=sflag, size = 0x4, scoped, tag = 'scoped memory for tpu_custom_call.1']
    #allocation7 [shape = 's32[1]{0}', space=sflag, size = 0x4, scoped, tag = 'scoped memory for tpu_custom_call.1']
    #allocation8 [shape = 'u8[65536]{0}', space=vmem, size = 0x10000, scoped, tag = 'input window, operand 2, single buffered']
    #allocation9 [shape = 's32[1]{0}', space=sflag, size = 0x4, scoped, tag = 'scoped memory for tpu_custom_call.1']
    #allocation10 [shape = 'u8[4096]{0}', space=vmem, size = 0x1000, scoped, tag = 'output window, operand 0, single buffered']
    %10 = vsyncpa [#allocation6], 0
    %11 = vsyncpa [#allocation9], 0
    %12 = vsyncpa [#allocation7], 0
    // Predicated region
    $region2: #{tpu_custom_call.1} parent=1 // pred_check
      _
    $region3: #{tpu_custom_call.1} parent=1 // pred_check_branch
      %14 = sbr.rel (0) target = $region5
    $region4: #{tpu_custom_call.1} parent=1 // pred_region
      %16 = vsyncadd [#allocation6], 0
      %s18 = sshll.u32 %s1, 4
      %s19 = int_to_ptr.hbm [resolvable:$true] %s18
      %s20 = sshll.u32 [#allocation5], 4
      %s21 = int_to_ptr.vmem [resolvable:$true] %s20
      %23 = dma.hbm_to_vmem [thread:$0]  %s19, 128, %s21, [#allocation6]
    $region5: #{tpu_custom_call.1} parent=1 // pred_fallthru
      _
    // Predicated region
    $region6: #{tpu_custom_call.1} parent=1 // pred_check
      _
    $region7: #{tpu_custom_call.1} parent=1 // pred_check_branch
      %25 = sbr.rel (0) target = $region9
    $region8: #{tpu_custom_call.1} parent=1 // pred_region
      %27 = vsyncadd [#allocation9], 0
      %s28 = sshll.u32 %s2, 4
      %s29 = int_to_ptr.hbm [resolvable:$true] %s28
      %s30 = sshll.u32 [#allocation8], 4
      %s31 = int_to_ptr.vmem [resolvable:$true] %s30
      %36 = dma.hbm_to_vmem [thread:$0]  %s29, 2048, %s31, [#allocation9], 128, 128, 8
    $region9: #{tpu_custom_call.1} parent=1 // pred_fallthru
      _
    // Predicated region
    $region10: #{tpu_custom_call.1} parent=1 // pred_check
      _
    $region11: #{tpu_custom_call.1} parent=1 // pred_check_branch
      %38 = sbr.rel (0) target = $region13
    $region12: #{tpu_custom_call.1} parent=1 // pred_region
      _
    $region13: #{tpu_custom_call.1} parent=1 // pred_fallthru
      _
    // Predicated region
    $region14: #{tpu_custom_call.1} parent=1 // pred_check
      _
    $region15: #{tpu_custom_call.1} parent=1 // pred_check_branch
      %40 = sbr.rel (0) target = $region17
    $region16: #{tpu_custom_call.1} parent=1 // pred_region
      %42 = dma.done [#allocation6], 128
    $region17: #{tpu_custom_call.1} parent=1 // pred_fallthru
      _
    // Predicated region
    $region18: #{tpu_custom_call.1} parent=1 // pred_check
      _
    $region19: #{tpu_custom_call.1} parent=1 // pred_check_branch
      %44 = sbr.rel (0) target = $region21
    $region20: #{tpu_custom_call.1} parent=1 // pred_region
      %46 = dma.done [#allocation9], 2048
    $region21: #{tpu_custom_call.1} parent=1 // pred_fallthru
      _
    %p47 = scmp.eq.s32.totalorder 0, 0
    // Predicated region
    $region22: #{tpu_custom_call.1} parent=1 // pred_check
      %p48 = pneg %p47
    $region23: #{tpu_custom_call.1} parent=1 // pred_check_branch
      %50 = sbr.rel (%p48) target = $region25
    $region24: #{tpu_custom_call.1} parent=1 // pred_region
      %51 = vst [vmem:[#allocation2] sm:$0xff] 0.0
    $region25: #{tpu_custom_call.1} parent=1 // pred_fallthru
      _
    %v52 = vld [vmem:[#allocation8] sm:$0xff]
    %v53 = vld [vmem:[#allocation8 + $0x8] sm:$0xff]
    %v54 = vld [vmem:[#allocation8 + $0x10] sm:$0xff]
    %v55 = vld [vmem:[#allocation8 + $0x18] sm:$0xff]
    %v56 = vld [vmem:[#allocation8 + $0x20] sm:$0xff]
    %v57 = vld [vmem:[#allocation8 + $0x28] sm:$0xff]
    %v58 = vld [vmem:[#allocation8 + $0x30] sm:$0xff]
    %v59 = vld [vmem:[#allocation8 + $0x38] sm:$0xff]
    %v60 = vld [vmem:[#allocation8 + $0x40] sm:$0xff]
    %v61 = vld [vmem:[#allocation8 + $0x48] sm:$0xff]
    %v62 = vld [vmem:[#allocation8 + $0x50] sm:$0xff]
    %v63 = vld [vmem:[#allocation8 + $0x58] sm:$0xff]
    %v64 = vld [vmem:[#allocation8 + $0x60] sm:$0xff]
    %v65 = vld [vmem:[#allocation8 + $0x68] sm:$0xff]
    %v66 = vld [vmem:[#allocation8 + $0x70] sm:$0xff]
    %v67 = vld [vmem:[#allocation8 + $0x78] sm:$0xff]
    %v68 = vlaneseq
    %v69 = vshrl.u32 %v68, 7
    %v70 = vadd.s32 %v69, 8
    %v71 = vadd.s32 %v69, 16
    %v72 = vadd.s32 %v69, 24
    %v73 = vadd.s32 %v69, 32
    %v74 = vadd.s32 %v69, 40
    %v75 = vadd.s32 %v69, 48
    %v76 = vadd.s32 %v69, 56
    %v77 = vadd.s32 %v69, 64
    %v78 = vadd.s32 %v69, 72
    %v79 = vadd.s32 %v69, 80
    %v80 = vadd.s32 %v69, 88
    %v81 = vadd.s32 %v69, 96
    %v82 = vadd.s32 %v69, 104
    %v83 = vadd.s32 %v69, 112
    %v84 = vadd.s32 %v69, 120
    %s85 = smul.u32 0, 128
    %v86 = vstv %s85
    %v87 = vadd.s32 %v69, %v86
    %v88 = vadd.s32 %v70, %v86
    %v89 = vadd.s32 %v71, %v86
    %v90 = vadd.s32 %v72, %v86
    %v91 = vadd.s32 %v73, %v86
    %v92 = vadd.s32 %v74, %v86
    %v93 = vadd.s32 %v75, %v86
    %v94 = vadd.s32 %v76, %v86
    %v95 = vadd.s32 %v77, %v86
    %v96 = vadd.s32 %v78, %v86
    %v97 = vadd.s32 %v79, %v86
    %v98 = vadd.s32 %v80, %v86
    %v99 = vadd.s32 %v81, %v86
    %v100 = vadd.s32 %v82, %v86
    %v101 = vadd.s32 %v83, %v86
    %v102 = vadd.s32 %v84, %v86
    %v103 = vlaneseq
    %v104 = vand.u32 %v103, 127
    %s105 = smul.u32 0, 128
    %v106 = vstv %s105
    %v107 = vadd.s32 %v104, %v106
    %v108 = vmul.u32 %v87, 128
    %v109 = vmul.u32 %v88, 128
    %v110 = vmul.u32 %v89, 128
    %v111 = vmul.u32 %v90, 128
    %v112 = vmul.u32 %v91, 128
    %v113 = vmul.u32 %v92, 128
    %v114 = vmul.u32 %v93, 128
    %v115 = vmul.u32 %v94, 128
    %v116 = vmul.u32 %v95, 128
    %v117 = vmul.u32 %v96, 128
    %v118 = vmul.u32 %v97, 128
    %v119 = vmul.u32 %v98, 128
    %v120 = vmul.u32 %v99, 128
    %v121 = vmul.u32 %v100, 128
    %v122 = vmul.u32 %v101, 128
    %v123 = vmul.u32 %v102, 128
    %v124 = vadd.s32 %v108, %v107
    %v125 = vadd.s32 %v109, %v107
    %v126 = vadd.s32 %v110, %v107
    %v127 = vadd.s32 %v111, %v107
    %v128 = vadd.s32 %v112, %v107
    %v129 = vadd.s32 %v113, %v107
    %v130 = vadd.s32 %v114, %v107
    %v131 = vadd.s32 %v115, %v107
    %v132 = vadd.s32 %v116, %v107
    %v133 = vadd.s32 %v117, %v107
    %v134 = vadd.s32 %v118, %v107
    %v135 = vadd.s32 %v119, %v107
    %v136 = vadd.s32 %v120, %v107
    %v137 = vadd.s32 %v121, %v107
    %v138 = vadd.s32 %v122, %v107
    %v139 = vadd.s32 %v123, %v107
    %s140 = sld [smem:[#allocation4]]
    %s141 = smul.u32 %s140, 2654435761
    %v142 = vstv %s141
    %v143 = vadd.s32 %v124, %v142
    %v144 = vadd.s32 %v125, %v142
    %v145 = vadd.s32 %v126, %v142
    %v146 = vadd.s32 %v127, %v142
    %v147 = vadd.s32 %v128, %v142
    %v148 = vadd.s32 %v129, %v142
    %v149 = vadd.s32 %v130, %v142
    %v150 = vadd.s32 %v131, %v142
    %v151 = vadd.s32 %v132, %v142
    %v152 = vadd.s32 %v133, %v142
    %v153 = vadd.s32 %v134, %v142
    %v154 = vadd.s32 %v135, %v142
    %v155 = vadd.s32 %v136, %v142
    %v156 = vadd.s32 %v137, %v142
    %v157 = vadd.s32 %v138, %v142
    %v158 = vadd.s32 %v139, %v142
    %v159 = vshrl.u32 %v143, 16
    %v160 = vshrl.u32 %v144, 16
    %v161 = vshrl.u32 %v145, 16
    %v162 = vshrl.u32 %v146, 16
    %v163 = vshrl.u32 %v147, 16
    %v164 = vshrl.u32 %v148, 16
    %v165 = vshrl.u32 %v149, 16
    %v166 = vshrl.u32 %v150, 16
    %v167 = vshrl.u32 %v151, 16
    %v168 = vshrl.u32 %v152, 16
    %v169 = vshrl.u32 %v153, 16
    %v170 = vshrl.u32 %v154, 16
    %v171 = vshrl.u32 %v155, 16
    %v172 = vshrl.u32 %v156, 16
    %v173 = vshrl.u32 %v157, 16
    %v174 = vshrl.u32 %v158, 16
    %v175 = vxor.u32 %v143, %v159
    %v176 = vxor.u32 %v144, %v160
    %v177 = vxor.u32 %v145, %v161
    %v178 = vxor.u32 %v146, %v162
    %v179 = vxor.u32 %v147, %v163
    %v180 = vxor.u32 %v148, %v164
    %v181 = vxor.u32 %v149, %v165
    %v182 = vxor.u32 %v150, %v166
    %v183 = vxor.u32 %v151, %v167
    %v184 = vxor.u32 %v152, %v168
    %v185 = vxor.u32 %v153, %v169
    %v186 = vxor.u32 %v154, %v170
    %v187 = vxor.u32 %v155, %v171
    %v188 = vxor.u32 %v156, %v172
    %v189 = vxor.u32 %v157, %v173
    %v190 = vxor.u32 %v158, %v174
    %v191 = vmul.u32 %v175, 2146121005
    %v192 = vmul.u32 %v176, 2146121005
    %v193 = vmul.u32 %v177, 2146121005
    %v194 = vmul.u32 %v178, 2146121005
    %v195 = vmul.u32 %v179, 2146121005
    %v196 = vmul.u32 %v180, 2146121005
    %v197 = vmul.u32 %v181, 2146121005
    %v198 = vmul.u32 %v182, 2146121005
    %v199 = vmul.u32 %v183, 2146121005
    %v200 = vmul.u32 %v184, 2146121005
    %v201 = vmul.u32 %v185, 2146121005
    %v202 = vmul.u32 %v186, 2146121005
    %v203 = vmul.u32 %v187, 2146121005
    %v204 = vmul.u32 %v188, 2146121005
    %v205 = vmul.u32 %v189, 2146121005
    %v206 = vmul.u32 %v190, 2146121005
    %v207 = vshrl.u32 %v191, 15
    %v208 = vshrl.u32 %v192, 15
    %v209 = vshrl.u32 %v193, 15
    %v210 = vshrl.u32 %v194, 15
    %v211 = vshrl.u32 %v195, 15
    %v212 = vshrl.u32 %v196, 15
    %v213 = vshrl.u32 %v197, 15
    %v214 = vshrl.u32 %v198, 15
    %v215 = vshrl.u32 %v199, 15
    %v216 = vshrl.u32 %v200, 15
    %v217 = vshrl.u32 %v201, 15
    %v218 = vshrl.u32 %v202, 15
    %v219 = vshrl.u32 %v203, 15
    %v220 = vshrl.u32 %v204, 15
    %v221 = vshrl.u32 %v205, 15
    %v222 = vshrl.u32 %v206, 15
    %v223 = vxor.u32 %v191, %v207
    %v224 = vxor.u32 %v192, %v208
    %v225 = vxor.u32 %v193, %v209
    %v226 = vxor.u32 %v194, %v210
    %v227 = vxor.u32 %v195, %v211
    %v228 = vxor.u32 %v196, %v212
    %v229 = vxor.u32 %v197, %v213
    %v230 = vxor.u32 %v198, %v214
    %v231 = vxor.u32 %v199, %v215
    %v232 = vxor.u32 %v200, %v216
    %v233 = vxor.u32 %v201, %v217
    %v234 = vxor.u32 %v202, %v218
    %v235 = vxor.u32 %v203, %v219
    %v236 = vxor.u32 %v204, %v220
    %v237 = vxor.u32 %v205, %v221
    %v238 = vxor.u32 %v206, %v222
    %v239 = vmul.u32 %v223, 2221713035
    %v240 = vmul.u32 %v224, 2221713035
    %v241 = vmul.u32 %v225, 2221713035
    %v242 = vmul.u32 %v226, 2221713035
    %v243 = vmul.u32 %v227, 2221713035
    %v244 = vmul.u32 %v228, 2221713035
    %v245 = vmul.u32 %v229, 2221713035
    %v246 = vmul.u32 %v230, 2221713035
    %v247 = vmul.u32 %v231, 2221713035
    %v248 = vmul.u32 %v232, 2221713035
    %v249 = vmul.u32 %v233, 2221713035
    %v250 = vmul.u32 %v234, 2221713035
    %v251 = vmul.u32 %v235, 2221713035
    %v252 = vmul.u32 %v236, 2221713035
    %v253 = vmul.u32 %v237, 2221713035
    %v254 = vmul.u32 %v238, 2221713035
    %v255 = vshrl.u32 %v239, 16
    %v256 = vshrl.u32 %v240, 16
    %v257 = vshrl.u32 %v241, 16
    %v258 = vshrl.u32 %v242, 16
    %v259 = vshrl.u32 %v243, 16
    %v260 = vshrl.u32 %v244, 16
    %v261 = vshrl.u32 %v245, 16
    %v262 = vshrl.u32 %v246, 16
    %v263 = vshrl.u32 %v247, 16
    %v264 = vshrl.u32 %v248, 16
    %v265 = vshrl.u32 %v249, 16
    %v266 = vshrl.u32 %v250, 16
    %v267 = vshrl.u32 %v251, 16
    %v268 = vshrl.u32 %v252, 16
    %v269 = vshrl.u32 %v253, 16
    %v270 = vshrl.u32 %v254, 16
    %v271 = vxor.u32 %v239, %v255
    %v272 = vxor.u32 %v240, %v256
    %v273 = vxor.u32 %v241, %v257
    %v274 = vxor.u32 %v242, %v258
    %v275 = vxor.u32 %v243, %v259
    %v276 = vxor.u32 %v244, %v260
    %v277 = vxor.u32 %v245, %v261
    %v278 = vxor.u32 %v246, %v262
    %v279 = vxor.u32 %v247, %v263
    %v280 = vxor.u32 %v248, %v264
    %v281 = vxor.u32 %v249, %v265
    %v282 = vxor.u32 %v250, %v266
    %v283 = vxor.u32 %v251, %v267
    %v284 = vxor.u32 %v252, %v268
    %v285 = vxor.u32 %v253, %v269
    %v286 = vxor.u32 %v254, %v270
    %v287 = vadd.s32 %v271, 2147483648
    %vm289 = vcmp.ge.s32.totalorder %v287, 0
    %v290 = vadd.s32 %v272, 2147483648
    %vm292 = vcmp.ge.s32.totalorder %v290, 0
    %v293 = vadd.s32 %v273, 2147483648
    %vm295 = vcmp.ge.s32.totalorder %v293, 0
    %v296 = vadd.s32 %v274, 2147483648
    %vm298 = vcmp.ge.s32.totalorder %v296, 0
    %v299 = vadd.s32 %v275, 2147483648
    %vm301 = vcmp.ge.s32.totalorder %v299, 0
    %v302 = vadd.s32 %v276, 2147483648
    %vm304 = vcmp.ge.s32.totalorder %v302, 0
    %v305 = vadd.s32 %v277, 2147483648
    %vm307 = vcmp.ge.s32.totalorder %v305, 0
    %v308 = vadd.s32 %v278, 2147483648
    %vm310 = vcmp.ge.s32.totalorder %v308, 0
    %v311 = vadd.s32 %v279, 2147483648
    %vm313 = vcmp.ge.s32.totalorder %v311, 0
    %v314 = vadd.s32 %v280, 2147483648
    %vm316 = vcmp.ge.s32.totalorder %v314, 0
    %v317 = vadd.s32 %v281, 2147483648
    %vm319 = vcmp.ge.s32.totalorder %v317, 0
    %v320 = vadd.s32 %v282, 2147483648
    %vm322 = vcmp.ge.s32.totalorder %v320, 0
    %v323 = vadd.s32 %v283, 2147483648
    %vm325 = vcmp.ge.s32.totalorder %v323, 0
    %v326 = vadd.s32 %v284, 2147483648
    %vm328 = vcmp.ge.s32.totalorder %v326, 0
    %v329 = vadd.s32 %v285, 2147483648
    %vm331 = vcmp.ge.s32.totalorder %v329, 0
    %v332 = vadd.s32 %v286, 2147483648
    %vm334 = vcmp.ge.s32.totalorder %v332, 0
    %v335 = vsel %vm289, %v52, 0.0
    %v336 = vsel %vm292, %v53, 0.0
    %v337 = vsel %vm295, %v54, 0.0
    %v338 = vsel %vm298, %v55, 0.0
    %v339 = vsel %vm301, %v56, 0.0
    %v340 = vsel %vm304, %v57, 0.0
    %v341 = vsel %vm307, %v58, 0.0
    %v342 = vsel %vm310, %v59, 0.0
    %v343 = vsel %vm313, %v60, 0.0
    %v344 = vsel %vm316, %v61, 0.0
    %v345 = vsel %vm319, %v62, 0.0
    %v346 = vsel %vm322, %v63, 0.0
    %v347 = vsel %vm325, %v64, 0.0
    %v348 = vsel %vm328, %v65, 0.0
    %v349 = vsel %vm331, %v66, 0.0
    %v350 = vsel %vm334, %v67, 0.0
    %v351 = vld [vmem:[#allocation2] sm:$0xff]
    %v352 = vld [vmem:[#allocation5] sm:$0xff]
    %353 = vmatpush.msra.mxu0 %v350
    %354 = vmatpush.msra.mxu0 %v349
    %355 = vmatpush.msra.mxu0 %v348
    %356 = vmatpush.msra.mxu0 %v347
    %357 = vmatpush.msra.mxu0 %v346
    %358 = vmatpush.msra.mxu0 %v345
    %359 = vmatpush.msra.mxu0 %v344
    %360 = vmatpush.msra.mxu0 %v343
    %361 = vmatpush.msra.mxu0 %v342
    %362 = vmatpush.msra.mxu0 %v341
    %363 = vmatpush.msra.mxu0 %v340
    %364 = vmatpush.msra.mxu0 %v339
    %365 = vmatpush.msra.mxu0 %v338
    %366 = vmatpush.msra.mxu0 %v337
    %367 = vmatpush.msra.mxu0 %v336
    %368 = vmatpush.msra.mxu0 %v335
    %369 = vmatmul.f32.gmra.mxu0 %v352
    %v370 = vpop.f32.mrf.mxu0
    %v371 = vadd.f32 0.0, %v370
    %372 = vdwg.mxu0
    %v373 = vadd.f32 %v351, %v371
    %374 = vst [vmem:[#allocation2] sm:$0xff] %v373
    // Predicated region
    $region26: #{tpu_custom_call.1} parent=1 // pred_check
      %p375 = pneg %p47
    $region27: #{tpu_custom_call.1} parent=1 // pred_check_branch
      %377 = sbr.rel (%p375) target = $region29
    $region28: #{tpu_custom_call.1} parent=1 // pred_region
      %v378 = vld [vmem:[#allocation2] sm:$0xff]
      %v379 = vmul.f32 %v378, 2.0
      %v380 = vld [vmem:[%s3] sm:$0x1]
      %v382 = vperm.slane %v380, 0
      %v384 = vadd.f32 %v379, %v382
      %385 = vst [vmem:[#allocation10] sm:$0xff] %v384
    $region29: #{tpu_custom_call.1} parent=1 // pred_fallthru
      _
    // Predicated region
    $region30: #{tpu_custom_call.1} parent=1 // pred_check
      _
    $region31: #{tpu_custom_call.1} parent=1 // pred_check_branch
      %387 = sbr.rel (0) target = $region33
    $region32: #{tpu_custom_call.1} parent=1 // pred_region
      %389 = vsyncadd [#allocation7], 0
      %s391 = sshll.u32 [#allocation10], 4
      %s392 = int_to_ptr.vmem [resolvable:$true] %s391
      %s393 = sshll.u32 %s4, 4
      %s394 = int_to_ptr.hbm [resolvable:$true] %s393
      %396 = dma.vmem_to_hbm [thread:$0]  %s392, 128, %s394, [#allocation7]
    $region33: #{tpu_custom_call.1} parent=1 // pred_fallthru
      _
    // Predicated region
    $region34: #{tpu_custom_call.1} parent=1 // pred_check
      _
    $region35: #{tpu_custom_call.1} parent=1 // pred_check_branch
      %398 = sbr.rel (0) target = $region37
    $region36: #{tpu_custom_call.1} parent=1 // pred_region
      %400 = dma.done [#allocation7], 128
    $region37: #{tpu_custom_call.1} parent=1 // pred_fallthru
      _
    %401 = vsyncpa [#allocation6], 1
    %402 = vsyncpa [#allocation9], 1
    %403 = vsyncpa [#allocation7], 1

</llo_original>
